<compile_context>
chip_gen: v6e
topology: v6e:2x2x1
jax: 0.10.0
libtpu: 0.0.40
codegen_flags: <defaults>
</compile_context>

<pallas_src>
import jax
import jax.numpy as jnp
from jax.experimental import pallas as pl
from jax.experimental.pallas import tpu as pltpu


def _round_up(n: int, m: int) -> int:
    return -(-n // m) * m


def _budgets():
    """Generation-aware (per-buffer x-tile bytes, vmem_limit_bytes)."""
    vmem_bytes = None
    try:
        info = pltpu.get_tpu_info()
        vmem_bytes = getattr(info, "vmem_capacity_bytes", None)
    except Exception:
        vmem_bytes = None
    if vmem_bytes is None:
        vmem_bytes = 64 << 20  # unknown -> assume the smallest (v7x-class) VMEM
    if vmem_bytes <= (64 << 20):
        # v7x: 64 MiB VMEM per TensorCore -- keep double-buffering headroom.
        return 6 << 20, 48 << 20
    # v5e / v6e: 128 MiB physical VMEM.
    return 12 << 20, 96 << 20


# ---------------------------------------------------------------------------
# Kernels
# ---------------------------------------------------------------------------

def _folded_kernel(xf_ref, wsel_ref, b_ref, o_ref):
    # xf_ref:   (tr, 128)       lane-dense folded x tile (rows_per batch rows/row)
    # wsel_ref: (128, rows_per) block-diagonal weight matrix (resident)
    # b_ref:    (1,)            bias scalar in SMEM
    # o_ref:    (tr, rows_per)  outputs, row-major == batch order
    # Single f32 matmul on the otherwise-idle MXU does both the per-row
    # multiply and the width-F segment reduce.
    y = jnp.dot(xf_ref[...], wsel_ref[...], preferred_element_type=jnp.float32)
    o_ref[...] = (y + b_ref[0]).astype(o_ref.dtype)


def _rowwise_kernel(x_ref, w_ref, b_ref, o_ref):
    # x_ref: (tb, F) VMEM, w_ref: (1, F) VMEM (lane-dense),
    # b_ref: (1,) SMEM scalar, o_ref: (1, tb) lane-dense output slab.
    y = jnp.sum(x_ref[...] * w_ref[...], axis=-1) + b_ref[0]
    o_ref[...] = y[None, :].astype(o_ref.dtype)


# ---------------------------------------------------------------------------
# Wrappers
# ---------------------------------------------------------------------------

def _forward_folded(x32, w_vec, b1d, B, F, tile_budget, vmem_limit):
    rows_per = 128 // F                 # batch rows packed per lane-dense row
    R = -(-B // rows_per)               # folded rows

    # Fold F into the lane dimension.  Free reshape when B % rows_per == 0;
    # otherwise one small dense pad of the flat tail (far cheaper than the
    # descriptor-bound lane-padded (tb, F) DMA it replaces).
    flat = x32.reshape(B * F)
    if B % rows_per == 0:
        xf = flat.reshape(R, 128)
    else:
        xf = jnp.pad(flat, (0, R * 128 - B * F)).reshape(R, 128)

    # Block-diagonal weight: wsel[k*F + f, k] = w[f], so
    # (xf @ wsel)[r, k] = sum_f x[r*rows_per + k, f] * w[f].
    wsel = jnp.kron(jnp.eye(rows_per, dtype=jnp.float32), w_vec.reshape(F, 1))

    # Folded-row tile from the per-buffer VMEM budget (512 B per folded row);
    # split >= 2 ways when there is enough work so both v7x TensorCores get a
    # share of the "parallel" batch axis.
    budget_rows = max(8, ((tile_budget // 512) // 8) * 8)
    if R <= budget_rows:
        tr = _round_up(-(-R // 2), 8) if R >= 64 else R
    else:
        tr = budget_rows
    grid_r = -(-R // tr)

    out = pl.pallas_call(
        _folded_kernel,
        out_shape=jax.ShapeDtypeStruct((R, rows_per), jnp.float32),
        grid_spec=pl.GridSpec(
            grid=(grid_r,),
            in_specs=[
                pl.BlockSpec((tr, 128), lambda i: (i, 0)),           # x: tiled, lane-dense
                pl.BlockSpec((128, rows_per), lambda i: (0, 0)),     # weight: resident
                pl.BlockSpec(memory_space=pltpu.MemorySpace.SMEM),   # bias: SMEM scalar
            ],
            out_specs=pl.BlockSpec((tr, rows_per), lambda i: (i, 0)),
        ),
        compiler_params=pltpu.CompilerParams(
            dimension_semantics=("parallel",),
            vmem_limit_bytes=vmem_limit,
        ),
        cost_estimate=pl.CostEstimate(
            flops=2 * R * 128 * rows_per,
            transcendentals=0,
            bytes_accessed=4 * (R * 128 + 128 * rows_per + 1 + R * rows_per),
        ),
    )(xf, wsel, b1d)

    # (R, rows_per) row-major == batch order; padded tail rows are discarded.
    return out.reshape(R * rows_per)[:B].reshape(B, 1)


def _forward_rowwise(x32, w_vec, b1d, B, F, tile_budget, vmem_limit):
    # TODO(synk): F that doesn't divide 128 still lane-pads the (tb, F) VMEM
    # tile; narrow such F could be zero-padded up to a divisor of 128 in the
    # wrapper to recover the lane-dense DMA of the folded path.
    w2d = w_vec.reshape(1, F)

    # Batch tile from the per-buffer VMEM budget; the VMEM tile is lane-padded
    # to round_up(F, 128) lanes per row, so budget against that.  No wrapper
    # jnp.pad of x: the ragged last block reads OOB garbage rows that are
    # row-independent and masked off on store / sliced away by the caller.
    vmem_row_bytes = _round_up(F, 128) * 4
    budget_rows = max(128, ((tile_budget // vmem_row_bytes) // 128) * 128)
    if B <= budget_rows:
        tb = _round_up(-(-B // 2), 128) if B >= 1024 else B   # >=2 blocks for v7x
    else:
        tb = budget_rows
    grid_b = -(-B // tb)

    # TODO(synk): for very large F (F*4 bytes/row ~ the tile budget), add a
    # trailing "arbitrary" F-reduction grid axis with a VMEM f32 accumulator
    # (pl.when init/finalize) and keep tb <= 512 in that regime.
    out = pl.pallas_call(
        _rowwise_kernel,
        out_shape=jax.ShapeDtypeStruct((1, B), jnp.float32),
        grid_spec=pl.GridSpec(
            grid=(grid_b,),
            in_specs=[
                pl.BlockSpec((tb, F), lambda i: (i, 0)),             # x: batch-tiled
                pl.BlockSpec((1, F), lambda i: (0, 0)),              # weight: resident
                pl.BlockSpec(memory_space=pltpu.MemorySpace.SMEM),   # bias: SMEM scalar
            ],
            out_specs=pl.BlockSpec((1, tb), lambda i: (0, i)),       # lane-dense output
        ),
        compiler_params=pltpu.CompilerParams(
            dimension_semantics=("parallel",),
            vmem_limit_bytes=vmem_limit,
        ),
        cost_estimate=pl.CostEstimate(
            flops=2 * B * F,
            transcendentals=0,
            bytes_accessed=4 * (B * F + F + 1 + B),
        ),
    )(x32, w2d, b1d)

    return out.reshape(B, 1)


def linear_net_forward(x, weight, bias):
    """x: (B, F), weight: (1, F) (PyTorch layout), bias: (1,)  ->  (B, 1) f32."""
    B, F = x.shape
    tile_budget, vmem_limit = _budgets()

    x32 = x if x.dtype == jnp.float32 else x.astype(jnp.float32)
    w_vec = weight.reshape(F).astype(jnp.float32)
    b1d = bias.reshape(1).astype(jnp.float32)

    if 128 % F == 0:
        return _forward_folded(x32, w_vec, b1d, B, F, tile_budget, vmem_limit)
    return _forward_rowwise(x32, w_vec, b1d, B, F, tile_budget, vmem_limit)


# ---------------------------------------------------------------------------
# Demo / checks
# ---------------------------------------------------------------------------

if __name__ == "__main__":
    key = jax.random.PRNGKey(0)
    keys = jax.random.split(key, 4)

    def _bf16_exact(a):
        # Round demo inputs to bf16-representable values so the check is exact
        # regardless of how many MXU passes the f32 matmul uses.
        return a.astype(jnp.bfloat16).astype(jnp.float32)

    def _ref(x, w, b):
        return jnp.sum(x * w.reshape(1, -1), axis=-1, keepdims=True) + b.reshape(1, 1)

    def _check(x, w, b):
        y = linear_net_forward(x, w, b)
        jax.block_until_ready(y)
        assert y.shape == (x.shape[0], 1)
        assert jnp.allclose(y, _ref(x, w, b), atol=1e-5, rtol=1e-5)

    # 线性回归简单实现 uses num_inputs = 2 -> lane-folded path (128 % 2 == 0).
    n_feature = 2
    weight = _bf16_exact(0.01 * jax.random.normal(keys[0], (1, n_feature), jnp.float32))
    bias = jnp.zeros((1,), dtype=jnp.float32)

    # (a) tiny batch (padded folded tail), (b) batch divisible by 128//F
    # (free reshape, no pad), (c) larger ragged batch over several folded rows.
    for batch in (8, 128, 1000):
        x = _bf16_exact(jax.random.normal(keys[1], (batch, n_feature), jnp.float32))
        _check(x, weight, bias)

    # General path (F doesn't divide 128): single exact block, then a
    # multi-block ragged grid (exercises OOB tail handling without padding).
    n_feature2 = 40
    weight2 = _bf16_exact(0.01 * jax.random.normal(keys[2], (1, n_feature2), jnp.float32))
    bias2 = jnp.full((1,), 0.5, dtype=jnp.float32)
    for batch in (300, 2500):
        x = _bf16_exact(jax.random.normal(keys[3], (batch, n_feature2), jnp.float32))
        _check(x, weight2, bias2)

    print("KERNEL_OK")
</pallas_src>

<mosaic_0001>
module attributes {stable_mosaic.version = 11 : i64} {
  func.func @_folded_kernel(%arg0: i32, %arg1: memref<1x128xf32, #tpu.memory_space<vmem>>, %arg2: memref<128x64xf32, #tpu.memory_space<vmem>>, %arg3: memref<1xf32, #tpu.memory_space<smem>>, %arg4: memref<1x64xf32, #tpu.memory_space<vmem>>) attributes {dimension_semantics = [#tpu.dimension_semantics<parallel>], iteration_bounds = array<i64: 1>, scalar_prefetch = 0 : i64, scratch_operands = 0 : i64, tpu.core_type = #tpu.core_type<tc>, window_params = [{transform_indices = @transform_0, window_bounds = array<i64: 1, 128>}, {pipeline_mode = #tpu.pipeline_mode<synchronous>, transform_indices = @transform_1, window_bounds = array<i64: 128, 64>}, {transform_indices = @transform_2, window_bounds = array<i64: 1>}, {transform_indices = @transform_3, window_bounds = array<i64: 1, 64>}]} {
    %c0 = arith.constant 0 : index
    %c0_0 = arith.constant 0 : index
    %0 = vector.load %arg1[%c0, %c0_0] : memref<1x128xf32, #tpu.memory_space<vmem>>, vector<1x128xf32>
    %c0_1 = arith.constant 0 : index
    %c0_2 = arith.constant 0 : index
    %1 = vector.load %arg2[%c0_1, %c0_2] : memref<128x64xf32, #tpu.memory_space<vmem>>, vector<128x64xf32>
    %cst = arith.constant dense<0.000000e+00> : vector<1x64xf32>
    %2 = tpu.matmul %0, %1, %cst {dimension_numbers = #tpu.dot_dimension_numbers<[1], [0], [0], [1], [0, 0, 1, 1], [], []>} : vector<1x128xf32>, vector<128x64xf32>, vector<1x64xf32> -> vector<1x64xf32>
    %c0_3 = arith.constant 0 : index
    %3 = memref.load %arg3[%c0_3] : memref<1xf32, #tpu.memory_space<smem>>
    %4 = vector.broadcast %3 : f32 to vector<1x64xf32>
    %5 = arith.addf %2, %4 : vector<1x64xf32>
    %c0_4 = arith.constant 0 : index
    %c0_5 = arith.constant 0 : index
    %6 = vector.load %arg4[%c0_4, %c0_5] : memref<1x64xf32, #tpu.memory_space<vmem>>, vector<1x64xf32>
    tpu.vector_store %arg4[%c0_4, %c0_5], %5 {strides = array<i32>} : memref<1x64xf32, #tpu.memory_space<vmem>>, vector<1x64xf32>,
    return
  }
  func.func @transform_0(%arg0: i32) -> (i32, i32) {
    %c0_i32 = arith.constant 0 : i32
    %c0_i32_0 = arith.constant 0 : i32
    return %arg0, %c0_i32 : i32, i32
  }
  func.func @transform_1(%arg0: i32) -> (i32, i32) {
    %c0_i32 = arith.constant 0 : i32
    %c0_i32_0 = arith.constant 0 : i32
    %c0_i32_1 = arith.constant 0 : i32
    return %c0_i32, %c0_i32_0 : i32, i32
  }
  func.func @transform_2(%arg0: i32) -> i32 {
    %c0_i32 = arith.constant 0 : i32
    %c0_i32_0 = arith.constant 0 : i32
    return %c0_i32 : i32
  }
  func.func @transform_3(%arg0: i32) -> (i32, i32) {
    %c0_i32 = arith.constant 0 : i32
    %c0_i32_0 = arith.constant 0 : i32
    return %arg0, %c0_i32 : i32, i32
  }
}

</mosaic_0001>

<llo_original>
// kernel: tpu_custom_call.1
$region0: #{tpu_custom_call.1}
  #allocation0 [shape = 'u32[]', space=smem, size = 0x4, offset = 0x4, fixed_abs, tag = 'smem constant byte address 0x4 - core index']
  #allocation1 [shape = 'u32[144,128]{1,0:T(1,128)}', space=vmem, size = 0x12000, scoped, tag = 'internal scratch']
  #allocation2 [shape = 'f32[1]{0:T(128)S(6)}', space=smem, size = 0x200, scoped, tag = 'scoped memory for tpu_custom_call.1']
  %s0 = inlined_call_operand.vmem [shape: f32[1,128], index: 0, kind: input, shape index: {}]
  %s1 = inlined_call_operand.vmem [shape: f32[128,64], index: 1, kind: input, shape index: {}]
  %s2 = inlined_call_operand.<no memory space> [shape: f32[1], index: 2, kind: input, shape index: {}]
  %s3 = inlined_call_operand.hbm [shape: f32[1,64], index: 3, kind: output, shape index: {}]
  %s4 = sld [smem:[#allocation0]]
  $region22: #{tpu_custom_call.1} parent=0
    _
  %s6 = ssub.s32 1, %s4
  %s7 = scalar_select 0, %s6, %s4
  %8 = sst [smem:[#allocation2]] %s2
  $region1: #{tpu_custom_call.1} parent=0
    #allocation3 [shape = 'u8[512]{0}', space=vmem, size = 0x400, scoped, tag = 'output window, operand 0, single buffered']
    #allocation4 [shape = 's32[1]{0}', space=sflag, size = 0x4, scoped, tag = 'scoped memory for tpu_custom_call.1']
    %9 = vsyncpa [#allocation4], 0
    // Predicated region
    $region2: #{tpu_custom_call.1} parent=1 // pred_check
      _
    $region3: #{tpu_custom_call.1} parent=1 // pred_check_branch
      %11 = sbr.rel (0) target = $region5
    $region4: #{tpu_custom_call.1} parent=1 // pred_region
      _
    $region5: #{tpu_custom_call.1} parent=1 // pred_fallthru
      _
    // Predicated region
    $region6: #{tpu_custom_call.1} parent=1 // pred_check
      _
    $region7: #{tpu_custom_call.1} parent=1 // pred_check_branch
      %13 = sbr.rel (0) target = $region9
    $region8: #{tpu_custom_call.1} parent=1 // pred_region
      _
    $region9: #{tpu_custom_call.1} parent=1 // pred_fallthru
      _
    // Predicated region
    $region10: #{tpu_custom_call.1} parent=1 // pred_check
      _
    $region11: #{tpu_custom_call.1} parent=1 // pred_check_branch
      %15 = sbr.rel (0) target = $region13
    $region12: #{tpu_custom_call.1} parent=1 // pred_region
      _
    $region13: #{tpu_custom_call.1} parent=1 // pred_fallthru
      _
    %v16 = vld [vmem:[%s0] sm:$0x1]
    %v17 = vld [vmem:[%s1] sm:$0xff]
    %v18 = vld [vmem:[%s1 + $0x8] sm:$0xff]
    %v19 = vld [vmem:[%s1 + $0x10] sm:$0xff]
    %v20 = vld [vmem:[%s1 + $0x18] sm:$0xff]
    %v21 = vld [vmem:[%s1 + $0x20] sm:$0xff]
    %v22 = vld [vmem:[%s1 + $0x28] sm:$0xff]
    %v23 = vld [vmem:[%s1 + $0x30] sm:$0xff]
    %v24 = vld [vmem:[%s1 + $0x38] sm:$0xff]
    %v25 = vld [vmem:[%s1 + $0x40] sm:$0xff]
    %v26 = vld [vmem:[%s1 + $0x48] sm:$0xff]
    %v27 = vld [vmem:[%s1 + $0x50] sm:$0xff]
    %v28 = vld [vmem:[%s1 + $0x58] sm:$0xff]
    %v29 = vld [vmem:[%s1 + $0x60] sm:$0xff]
    %v30 = vld [vmem:[%s1 + $0x68] sm:$0xff]
    %v31 = vld [vmem:[%s1 + $0x70] sm:$0xff]
    %v32 = vld [vmem:[%s1 + $0x78] sm:$0xff]
    %s33 = sld [smem:[#allocation2]]
    %v34 = vstv %s33
    %35 = vmatprep.subr.mxu0 0.0
    %36 = vmatpush1.msra.mxu0 %v32
    %37 = vmatprep.subr.mxu0 0.0
    %38 = vmatpush1.msra.mxu0 %v31
    %39 = vmatprep.subr.mxu0 0.0
    %40 = vmatpush1.msra.mxu0 %v30
    %41 = vmatprep.subr.mxu0 0.0
    %42 = vmatpush1.msra.mxu0 %v29
    %43 = vmatprep.subr.mxu0 0.0
    %44 = vmatpush1.msra.mxu0 %v28
    %45 = vmatprep.subr.mxu0 0.0
    %46 = vmatpush1.msra.mxu0 %v27
    %47 = vmatprep.subr.mxu0 0.0
    %48 = vmatpush1.msra.mxu0 %v26
    %49 = vmatprep.subr.mxu0 0.0
    %50 = vmatpush1.msra.mxu0 %v25
    %51 = vmatprep.subr.mxu0 0.0
    %52 = vmatpush1.msra.mxu0 %v24
    %53 = vmatprep.subr.mxu0 0.0
    %54 = vmatpush1.msra.mxu0 %v23
    %55 = vmatprep.subr.mxu0 0.0
    %56 = vmatpush1.msra.mxu0 %v22
    %57 = vmatprep.subr.mxu0 0.0
    %58 = vmatpush1.msra.mxu0 %v21
    %59 = vmatprep.subr.mxu0 0.0
    %60 = vmatpush1.msra.mxu0 %v20
    %61 = vmatprep.subr.mxu0 0.0
    %62 = vmatpush1.msra.mxu0 %v19
    %63 = vmatprep.subr.mxu0 0.0
    %64 = vmatpush1.msra.mxu0 %v18
    %65 = vmatprep.subr.mxu0 0.0
    %66 = vmatpush1.msra.mxu0 %v17
    %67 = vmatprep.subr.mxu0 0.0
    %68 = vmatpush2.msra.mxu0 0.0
    %69 = vmatprep.subr.mxu0 0.0
    %70 = vmatpush2.msra.mxu0 0.0
    %71 = vmatprep.subr.mxu0 0.0
    %72 = vmatpush2.msra.mxu0 0.0
    %73 = vmatprep.subr.mxu0 0.0
    %74 = vmatpush2.msra.mxu0 0.0
    %75 = vmatprep.subr.mxu0 0.0
    %76 = vmatpush2.msra.mxu0 0.0
    %77 = vmatprep.subr.mxu0 0.0
    %78 = vmatpush2.msra.mxu0 0.0
    %79 = vmatprep.subr.mxu0 0.0
    %80 = vmatpush2.msra.mxu0 0.0
    %81 = vmatprep.subr.mxu0 0.0
    %82 = vmatpush2.msra.mxu0 0.0
    %83 = vmatprep.subr.mxu0 0.0
    %84 = vmatpush2.msra.mxu0 0.0
    %85 = vmatprep.subr.mxu0 0.0
    %86 = vmatpush2.msra.mxu0 0.0
    %87 = vmatprep.subr.mxu0 0.0
    %88 = vmatpush2.msra.mxu0 0.0
    %89 = vmatprep.subr.mxu0 0.0
    %90 = vmatpush2.msra.mxu0 0.0
    %91 = vmatprep.subr.mxu0 0.0
    %92 = vmatpush2.msra.mxu0 0.0
    %93 = vmatprep.subr.mxu0 0.0
    %94 = vmatpush2.msra.mxu0 0.0
    %95 = vmatprep.subr.mxu0 0.0
    %96 = vmatpush2.msra.mxu0 0.0
    %97 = vmatprep.subr.mxu0 0.0
    %98 = vmatpush2.msra.mxu0 0.0
    %99 = vmatprep.mubr.f32.mxu0 0.0
    %100 = vmatmul.mubr.f32.gmra.mxu0 %v16
    %v101 = vpop.f32.mrf.mxu0
    %v102 = vadd.f32 %v34, %v101
    %v103 = vpop.f32.mrf.mxu0
    %104 = vdwg.mxu0
    %vm105 = vcmask 516096
    %106 = vst.msk [vmem:[#allocation3] sm:$0x1] %vm105, %v102
    // Predicated region
    $region14: #{tpu_custom_call.1} parent=1 // pred_check
      _
    $region15: #{tpu_custom_call.1} parent=1 // pred_check_branch
      %108 = sbr.rel (0) target = $region17
    $region16: #{tpu_custom_call.1} parent=1 // pred_region
      %s110 = ssub.s32 16, 16
      %111 = vsyncadd [#allocation4], %s110
      %s113 = sshll.u32 [#allocation3], 4
      %s114 = int_to_ptr.vmem [resolvable:$true] %s113
      %116 = dma.vmem_to_hbm [thread:$0]  %s114, 16, %s3, [#allocation4]
    $region17: #{tpu_custom_call.1} parent=1 // pred_fallthru
      _
    // Predicated region
    $region18: #{tpu_custom_call.1} parent=1 // pred_check
      _
    $region19: #{tpu_custom_call.1} parent=1 // pred_check_branch
      %118 = sbr.rel (0) target = $region21
    $region20: #{tpu_custom_call.1} parent=1 // pred_region
      %119 = dma.done [#allocation4], 16
    $region21: #{tpu_custom_call.1} parent=1 // pred_fallthru
      _
    %120 = vsyncpa [#allocation4], 1

</llo_original>
